<compile_context>
chip_gen: v5e
topology: v5e:2x2
jax: 0.10.0
libtpu: 0.0.40
codegen_flags: <defaults>
</compile_context>

<pallas_src>
import functools

import jax
import jax.numpy as jnp
from jax.experimental import pallas as pl
from jax.experimental.pallas import tpu as pltpu

LANE = 128


def _round_up(x, m):
    return (x + m - 1) // m * m


def _pick_tile_rows(hw, max_rows=2048):
    """Largest power-of-two (>=16) divisor of hw that is <= max_rows, else hw."""
    best = None
    t = 16
    while t <= min(hw, max_rows):
        if hw % t == 0:
            best = t
        t *= 2
    # TODO(synk): for awkward H*W with no pow2 divisor this falls back to the
    # full spatial extent; add a masked tail tile if that ever exceeds VMEM.
    return best if best is not None else hw


# ----------------------------------------------------------------------------
# Fused kernel: conv-matmul + ReLU + GAP accumulation + head
# ----------------------------------------------------------------------------
def _fused_kernel(p_ref, w_ref, mean_ref, istd_ref, wgt_ref, bg_ref,
                  logits_ref, proj_ref, acc_ref, *, inv_hw):
    # p_ref:     (tile_rows, C9)  bf16  im2col patch tile of image n (n squeezed)
    # w_ref:     (C9, DP)         bf16  conv weight (transposed, D padded to 128)
    # mean_ref:  (1, DP) f32      istd_ref: (1, DP) f32 (reciprocal of proj_std)
    # wgt_ref:   (DP, KP) f32     W_g.T zero-padded
    # bg_ref:    (1, KP)  f32
    # logits_ref:(1, KP)  proj_ref:(1, DP)   written at the last spatial step
    # acc_ref:   (tile_rows, DP) f32 scratch, persists across the spatial axis
    s = pl.program_id(1)

    @pl.when(s == 0)
    def _init():
        acc_ref[...] = jnp.zeros_like(acc_ref)

    # conv-as-matmul on the MXU (bf16 operands, f32 accumulation) + ReLU.
    conv = jnp.dot(p_ref[...], w_ref[...], preferred_element_type=jnp.float32)
    # Pure full-vreg VALU add per step; no per-step cross-sublane reduction.
    acc_ref[...] += jnp.maximum(conv, 0.0)

    @pl.when(s == pl.num_programs(1) - 1)
    def _finalize():
        # Global average pool: one cross-sublane reduce per image.
        feat = jnp.sum(acc_ref[...], axis=0, keepdims=True) * jnp.float32(inv_hw)
        proj = (feat - mean_ref[...]) * istd_ref[...]          # (x - mean) / std
        proj_ref[...] = proj.astype(proj_ref.dtype)
        logits = jnp.dot(proj, wgt_ref[...],
                         preferred_element_type=jnp.float32) + bg_ref[...]
        logits_ref[...] = logits.astype(logits_ref.dtype)


# ----------------------------------------------------------------------------
# Glue: im2col for the 3x3 "same" conv of the synthetic backbone
# ----------------------------------------------------------------------------
def im2col_3x3_same(x):
    # x: (N, C, H, W) -> (N, H*W, C*9), patch layout c-major then (ki, kj)
    N, C, H, W = x.shape
    xp = jnp.pad(x, ((0, 0), (0, 0), (1, 1), (1, 1)))
    taps = []
    for i in range(3):
        for j in range(3):
            taps.append(xp[:, :, i:i + H, j:j + W])
    p = jnp.stack(taps, axis=2)              # (N, C, 9, H, W)
    p = p.reshape(N, C * 9, H * W)           # flattened as c*9 + tap
    return p.transpose(0, 2, 1)              # (N, H*W, C*9)


# ----------------------------------------------------------------------------
# Full forward (mirrors standard_model.forward)
# ----------------------------------------------------------------------------
def standard_model_forward(x, params, *, tile_rows=None):
    conv_w = params["conv_w"]                    # (D, C_in, 3, 3)
    W_g, b_g = params["W_g"], params["b_g"]      # (K, D), (K,)
    proj_mean, proj_std = params["proj_mean"], params["proj_std"]

    N, C, H, W = x.shape
    D = conv_w.shape[0]
    K = W_g.shape[0]
    HW = H * W
    C9 = C * 9

    DP = _round_up(D, LANE)
    KP = _round_up(K, LANE)

    if tile_rows is None:
        tile_rows = _pick_tile_rows(HW)
    assert HW % tile_rows == 0
    S = HW // tile_rows

    # ---- im2col patches: contraction axis kept at natural width C*9 (no lane
    # padding; BlockSpec last dim == full array dim), bf16 to halve HBM bytes.
    patches = im2col_3x3_same(x).astype(jnp.bfloat16)            # (N, HW, C9)

    # ---- conv weight -> (C9, DP): D zero-padded to 128 lanes, bf16 ----
    wmat = conv_w.reshape(D, C9).T.astype(jnp.float32)
    wmat = jnp.pad(wmat, ((0, 0), (0, DP - D))).astype(jnp.bfloat16)

    # ---- head params (f32), padded & lane-dense; inv_std precomputed ----
    mean_p = jnp.pad(proj_mean.reshape(1, D).astype(jnp.float32),
                     ((0, 0), (0, DP - D)))
    istd_p = jnp.pad((1.0 / proj_std).reshape(1, D).astype(jnp.float32),
                     ((0, 0), (0, DP - D)), constant_values=1.0)
    wg_t = jnp.pad(W_g.T.astype(jnp.float32), ((0, DP - D), (0, KP - K)))
    bg_p = jnp.pad(b_g.reshape(1, K).astype(jnp.float32), ((0, 0), (0, KP - K)))

    kernel = functools.partial(_fused_kernel, inv_hw=1.0 / float(HW))

    # ---- cost estimate (unpadded contraction, bf16 operands) ----
    flops = int(2 * N * HW * C9 * DP + 2 * N * DP * KP)
    bytes_accessed = int(
        patches.size * patches.dtype.itemsize
        + wmat.size * wmat.dtype.itemsize
        + 4 * (mean_p.size + istd_p.size + wg_t.size + bg_p.size)
        + 4 * N * (KP + DP))

    # ---- VMEM budget: patch double-buffer + f32 conv tile + f32 accumulator
    # + (double-buffered) constants; capped below v7x's 64 MiB physical VMEM.
    vmem_bytes = (
        2 * tile_rows * C9 * patches.dtype.itemsize
        + 2 * wmat.size * wmat.dtype.itemsize
        + 2 * 4 * (mean_p.size + istd_p.size + wg_t.size + bg_p.size)
        + 4 * tile_rows * DP          # f32 conv/ReLU intermediate
        + 4 * tile_rows * DP          # f32 pooled-sum accumulator scratch
        + 2 * 4 * 2 * (KP + DP))      # tiny outputs (double-buffered)
    vmem_limit = int(min(max(2 * vmem_bytes + (2 << 20), 8 << 20), 56 << 20))

    logits_p, proj_p = pl.pallas_call(
        kernel,
        out_shape=(
            jax.ShapeDtypeStruct((N, 1, KP), jnp.float32),   # logits (padded)
            jax.ShapeDtypeStruct((N, 1, DP), jnp.float32),   # proj_c (padded)
        ),
        grid_spec=pltpu.PrefetchScalarGridSpec(
            num_scalar_prefetch=0,
            grid=(N, S),
            in_specs=[
                pl.BlockSpec((None, tile_rows, C9), lambda n, s: (n, s, 0)),
                pl.BlockSpec((C9, DP), lambda n, s: (0, 0)),
                pl.BlockSpec((1, DP), lambda n, s: (0, 0)),
                pl.BlockSpec((1, DP), lambda n, s: (0, 0)),
                pl.BlockSpec((DP, KP), lambda n, s: (0, 0)),
                pl.BlockSpec((1, KP), lambda n, s: (0, 0)),
            ],
            out_specs=(
                pl.BlockSpec((None, 1, KP), lambda n, s: (n, 0, 0)),
                pl.BlockSpec((None, 1, DP), lambda n, s: (n, 0, 0)),
            ),
            scratch_shapes=[pltpu.VMEM((tile_rows, DP), jnp.float32)],
        ),
        compiler_params=pltpu.CompilerParams(
            dimension_semantics=("parallel", "arbitrary"),
            vmem_limit_bytes=vmem_limit,
        ),
        cost_estimate=pl.CostEstimate(
            flops=flops, transcendentals=0, bytes_accessed=bytes_accessed),
    )(patches, wmat, mean_p, istd_p, wg_t, bg_p)

    logits = logits_p[:, 0, :K]
    proj_c = proj_p[:, 0, :D]
    return logits, proj_c


# ----------------------------------------------------------------------------
# Plain-JAX reference for a sanity check
# ----------------------------------------------------------------------------
def reference_forward(x, params):
    conv_w = params["conv_w"]
    y = jax.lax.conv_general_dilated(
        x, conv_w, window_strides=(1, 1), padding="SAME",
        dimension_numbers=("NCHW", "OIHW", "NCHW"),
    )
    y = jnp.maximum(y, 0.0)
    feat = jnp.mean(y, axis=(2, 3))                      # (N, D)
    proj_c = (feat - params["proj_mean"]) / params["proj_std"]
    logits = proj_c @ params["W_g"].T + params["b_g"]
    return logits, proj_c


if __name__ == "__main__":
    N, Cin, H, W = 2, 4, 16, 16     # input image batch
    D = 32                          # backbone feature dim (= W_g.shape[1])
    K = 10                          # number of classes   (= W_g.shape[0])

    key = jax.random.PRNGKey(0)
    k1, k2, k3, k4, k5, k6 = jax.random.split(key, 6)

    x = jax.random.normal(k1, (N, Cin, H, W), jnp.float32)
    params = {
        "conv_w":    jax.random.normal(k2, (D, Cin, 3, 3), jnp.float32) * 0.1,
        "W_g":       jax.random.normal(k3, (K, D), jnp.float32) * 0.1,
        "b_g":       jax.random.normal(k4, (K,), jnp.float32) * 0.1,
        "proj_mean": jax.random.normal(k5, (D,), jnp.float32),
        "proj_std":  jax.random.uniform(k6, (D,), jnp.float32, minval=0.5, maxval=1.5),
    }

    # tile_rows=128 -> 2 spatial steps per image, so the pl.when accumulator
    # (zero at s==0, finalize at s==last) path is genuinely exercised; the
    # auto-picker would otherwise take the whole 256-row image in one step.
    fwd = jax.jit(functools.partial(standard_model_forward, tile_rows=128))
    logits, proj_c = fwd(x, params)
    jax.block_until_ready((logits, proj_c))

    ref_logits, ref_proj = reference_forward(x, params)
    assert logits.shape == (N, K) and proj_c.shape == (N, D)
    assert jnp.allclose(logits, ref_logits, atol=1e-2, rtol=1e-2)
    assert jnp.allclose(proj_c, ref_proj, atol=1e-2, rtol=1e-2)

    print("KERNEL_OK")
</pallas_src>

<mosaic_0001>
module attributes {stable_mosaic.version = 11 : i64} {
  func.func @_fused_kernel(%arg0: i32, %arg1: i32, %arg2: memref<1x128x36xbf16, #tpu.memory_space<vmem>>, %arg3: memref<36x128xbf16, #tpu.memory_space<vmem>>, %arg4: memref<1x128xf32, #tpu.memory_space<vmem>>, %arg5: memref<1x128xf32, #tpu.memory_space<vmem>>, %arg6: memref<128x128xf32, #tpu.memory_space<vmem>>, %arg7: memref<1x128xf32, #tpu.memory_space<vmem>>, %arg8: memref<1x1x128xf32, #tpu.memory_space<vmem>>, %arg9: memref<1x1x128xf32, #tpu.memory_space<vmem>>, %arg10: memref<128x128xf32, #tpu.memory_space<vmem>>) attributes {dimension_semantics = [#tpu.dimension_semantics<parallel>, #tpu.dimension_semantics<arbitrary>], iteration_bounds = array<i64: 2, 2>, scalar_prefetch = 0 : i64, scratch_operands = 1 : i64, tpu.core_type = #tpu.core_type<tc>, window_params = [{transform_indices = @transform_0, window_bounds = array<i64: 1, 128, 36>}, {pipeline_mode = #tpu.pipeline_mode<synchronous>, transform_indices = @transform_1, window_bounds = array<i64: 36, 128>}, {pipeline_mode = #tpu.pipeline_mode<synchronous>, transform_indices = @transform_2, window_bounds = array<i64: 1, 128>}, {pipeline_mode = #tpu.pipeline_mode<synchronous>, transform_indices = @transform_3, window_bounds = array<i64: 1, 128>}, {pipeline_mode = #tpu.pipeline_mode<synchronous>, transform_indices = @transform_4, window_bounds = array<i64: 128, 128>}, {pipeline_mode = #tpu.pipeline_mode<synchronous>, transform_indices = @transform_5, window_bounds = array<i64: 1, 128>}, {transform_indices = @transform_6, window_bounds = array<i64: 1, 1, 128>}, {transform_indices = @transform_7, window_bounds = array<i64: 1, 1, 128>}]} {
    %c0_i32 = arith.constant 0 : i32
    %0 = arith.cmpi eq, %arg1, %c0_i32 : i32
    %1 = arith.extui %0 : i1 to i32
    %c0_i32_0 = arith.constant 0 : i32
    %2 = arith.cmpi ne, %1, %c0_i32_0 : i32
    scf.if %2 {
      %cst_11 = arith.constant 0.000000e+00 : f32
      %15 = vector.broadcast %cst_11 : f32 to vector<128x128xf32>
      %c0_12 = arith.constant 0 : index
      %c0_13 = arith.constant 0 : index
      %16 = vector.load %arg10[%c0_12, %c0_13] : memref<128x128xf32, #tpu.memory_space<vmem>>, vector<128x128xf32>
      tpu.vector_store %arg10[%c0_12, %c0_13], %15 {strides = array<i32>} : memref<128x128xf32, #tpu.memory_space<vmem>>, vector<128x128xf32>,
    } else {
    }
    %c0 = arith.constant 0 : index
    %c0_1 = arith.constant 0 : index
    %c0_2 = arith.constant 0 : index
    %3 = vector.load %arg2[%c0, %c0_1, %c0_2] : memref<1x128x36xbf16, #tpu.memory_space<vmem>>, vector<1x128x36xbf16>
    %4 = vector.shape_cast %3 : vector<1x128x36xbf16> to vector<128x36xbf16>
    %c0_3 = arith.constant 0 : index
    %c0_4 = arith.constant 0 : index
    %5 = vector.load %arg3[%c0_3, %c0_4] : memref<36x128xbf16, #tpu.memory_space<vmem>>, vector<36x128xbf16>
    %cst = arith.constant dense<0.000000e+00> : vector<128x128xf32>
    %6 = tpu.matmul %4, %5, %cst {dimension_numbers = #tpu.dot_dimension_numbers<[1], [0], [0], [1], [0, 0, 1, 1], [], []>} : vector<128x36xbf16>, vector<36x128xbf16>, vector<128x128xf32> -> vector<128x128xf32>
    %c0_5 = arith.constant 0 : index
    %c0_6 = arith.constant 0 : index
    %7 = vector.load %arg10[%c0_5, %c0_6] : memref<128x128xf32, #tpu.memory_space<vmem>>, vector<128x128xf32>
    %cst_7 = arith.constant 0.000000e+00 : f32
    %8 = vector.broadcast %cst_7 : f32 to vector<128x128xf32>
    %9 = arith.maximumf %6, %8 : vector<128x128xf32>
    %10 = arith.addf %7, %9 : vector<128x128xf32>
    %c0_8 = arith.constant 0 : index
    %c0_9 = arith.constant 0 : index
    %11 = vector.load %arg10[%c0_8, %c0_9] : memref<128x128xf32, #tpu.memory_space<vmem>>, vector<128x128xf32>
    tpu.vector_store %arg10[%c0_8, %c0_9], %10 {strides = array<i32>} : memref<128x128xf32, #tpu.memory_space<vmem>>, vector<128x128xf32>,
    %c1_i32 = arith.constant 1 : i32
    %12 = arith.cmpi eq, %arg1, %c1_i32 : i32
    %13 = arith.extui %12 : i1 to i32
    %c0_i32_10 = arith.constant 0 : i32
    %14 = arith.cmpi ne, %13, %c0_i32_10 : i32
    scf.if %14 {
      %c0_11 = arith.constant 0 : index
      %c0_12 = arith.constant 0 : index
      %15 = vector.load %arg10[%c0_11, %c0_12] : memref<128x128xf32, #tpu.memory_space<vmem>>, vector<128x128xf32>
      %cst_13 = arith.constant dense<0.000000e+00> : vector<128xf32>
      %16 = vector.multi_reduction <add>, %15, %cst_13 [0] : vector<128x128xf32> to vector<128xf32>
      %17 = vector.shape_cast %16 : vector<128xf32> to vector<1x128xf32>
      %cst_14 = arith.constant 3.906250e-03 : f32
      %18 = vector.broadcast %cst_14 : f32 to vector<1x128xf32>
      %19 = arith.mulf %17, %18 : vector<1x128xf32>
      %c0_15 = arith.constant 0 : index
      %c0_16 = arith.constant 0 : index
      %20 = vector.load %arg4[%c0_15, %c0_16] : memref<1x128xf32, #tpu.memory_space<vmem>>, vector<1x128xf32>
      %21 = arith.subf %19, %20 : vector<1x128xf32>
      %c0_17 = arith.constant 0 : index
      %c0_18 = arith.constant 0 : index
      %22 = vector.load %arg5[%c0_17, %c0_18] : memref<1x128xf32, #tpu.memory_space<vmem>>, vector<1x128xf32>
      %23 = arith.mulf %21, %22 : vector<1x128xf32>
      %c0_19 = arith.constant 0 : index
      %c0_20 = arith.constant 0 : index
      %c0_21 = arith.constant 0 : index
      %24 = vector.load %arg9[%c0_19, %c0_20, %c0_21] : memref<1x1x128xf32, #tpu.memory_space<vmem>>, vector<1x1x128xf32>
      %25 = vector.shape_cast %24 : vector<1x1x128xf32> to vector<1x128xf32>
      %26 = vector.shape_cast %23 : vector<1x128xf32> to vector<1x1x128xf32>
      tpu.vector_store %arg9[%c0_19, %c0_20, %c0_21], %26 {strides = array<i32>} : memref<1x1x128xf32, #tpu.memory_space<vmem>>, vector<1x1x128xf32>,
      %c0_22 = arith.constant 0 : index
      %c0_23 = arith.constant 0 : index
      %27 = vector.load %arg6[%c0_22, %c0_23] : memref<128x128xf32, #tpu.memory_space<vmem>>, vector<128x128xf32>
      %cst_24 = arith.constant dense<0.000000e+00> : vector<1x128xf32>
      %28 = tpu.matmul %23, %27, %cst_24 {dimension_numbers = #tpu.dot_dimension_numbers<[1], [0], [0], [1], [0, 0, 1, 1], [], []>} : vector<1x128xf32>, vector<128x128xf32>, vector<1x128xf32> -> vector<1x128xf32>
      %c0_25 = arith.constant 0 : index
      %c0_26 = arith.constant 0 : index
      %29 = vector.load %arg7[%c0_25, %c0_26] : memref<1x128xf32, #tpu.memory_space<vmem>>, vector<1x128xf32>
      %30 = arith.addf %28, %29 : vector<1x128xf32>
      %c0_27 = arith.constant 0 : index
      %c0_28 = arith.constant 0 : index
      %c0_29 = arith.constant 0 : index
      %31 = vector.load %arg8[%c0_27, %c0_28, %c0_29] : memref<1x1x128xf32, #tpu.memory_space<vmem>>, vector<1x1x128xf32>
      %32 = vector.shape_cast %31 : vector<1x1x128xf32> to vector<1x128xf32>
      %33 = vector.shape_cast %30 : vector<1x128xf32> to vector<1x1x128xf32>
      tpu.vector_store %arg8[%c0_27, %c0_28, %c0_29], %33 {strides = array<i32>} : memref<1x1x128xf32, #tpu.memory_space<vmem>>, vector<1x1x128xf32>,
    } else {
    }
    return
  }
  func.func @transform_0(%arg0: i32, %arg1: i32) -> (i32, i32, i32) {
    %c0_i32 = arith.constant 0 : i32
    %c0_i32_0 = arith.constant 0 : i32
    return %arg0, %arg1, %c0_i32 : i32, i32, i32
  }
  func.func @transform_1(%arg0: i32, %arg1: i32) -> (i32, i32) {
    %c0_i32 = arith.constant 0 : i32
    %c0_i32_0 = arith.constant 0 : i32
    %c0_i32_1 = arith.constant 0 : i32
    return %c0_i32, %c0_i32_0 : i32, i32
  }
  func.func @transform_2(%arg0: i32, %arg1: i32) -> (i32, i32) {
    %c0_i32 = arith.constant 0 : i32
    %c0_i32_0 = arith.constant 0 : i32
    %c0_i32_1 = arith.constant 0 : i32
    return %c0_i32, %c0_i32_0 : i32, i32
  }
  func.func @transform_3(%arg0: i32, %arg1: i32) -> (i32, i32) {
    %c0_i32 = arith.constant 0 : i32
    %c0_i32_0 = arith.constant 0 : i32
    %c0_i32_1 = arith.constant 0 : i32
    return %c0_i32, %c0_i32_0 : i32, i32
  }
  func.func @transform_4(%arg0: i32, %arg1: i32) -> (i32, i32) {
    %c0_i32 = arith.constant 0 : i32
    %c0_i32_0 = arith.constant 0 : i32
    %c0_i32_1 = arith.constant 0 : i32
    return %c0_i32, %c0_i32_0 : i32, i32
  }
  func.func @transform_5(%arg0: i32, %arg1: i32) -> (i32, i32) {
    %c0_i32 = arith.constant 0 : i32
    %c0_i32_0 = arith.constant 0 : i32
    %c0_i32_1 = arith.constant 0 : i32
    return %c0_i32, %c0_i32_0 : i32, i32
  }
  func.func @transform_6(%arg0: i32, %arg1: i32) -> (i32, i32, i32) {
    %c0_i32 = arith.constant 0 : i32
    %c0_i32_0 = arith.constant 0 : i32
    %c0_i32_1 = arith.constant 0 : i32
    return %arg0, %c0_i32, %c0_i32_0 : i32, i32, i32
  }
  func.func @transform_7(%arg0: i32, %arg1: i32) -> (i32, i32, i32) {
    %c0_i32 = arith.constant 0 : i32
    %c0_i32_0 = arith.constant 0 : i32
    %c0_i32_1 = arith.constant 0 : i32
    return %arg0, %c0_i32, %c0_i32_0 : i32, i32, i32
  }
}

</mosaic_0001>

<llo_original>
// kernel: standard_model_forward.1
$region0: #{standard_model_forward.1}
  #allocation0 [shape = 'u32[]', space=smem, size = 0x4, offset = 0x4, fixed_abs, tag = 'smem constant byte address 0x4 - core index']
  #allocation1 [shape = 'u32[72,128]{1,0:T(1,128)}', space=vmem, size = 0x9000, scoped, tag = 'internal scratch']
  #allocation2 [shape = 'f32[128,128]{1,0:T(8,128)}', space=vmem, size = 0x10000, scoped, tag = 'scratch operand']
  %s0 = inlined_call_operand.vmem [shape: bf16[2,256,36], index: 0, kind: input, shape index: {}]
  %s1 = inlined_call_operand.vmem [shape: bf16[36,128], index: 1, kind: input, shape index: {}]
  %s2 = inlined_call_operand.vmem [shape: f32[1,128], index: 2, kind: input, shape index: {}]
  %s3 = inlined_call_operand.vmem [shape: f32[1,128], index: 3, kind: input, shape index: {}]
  %s4 = inlined_call_operand.vmem [shape: f32[128,128], index: 4, kind: input, shape index: {}]
  %s5 = inlined_call_operand.vmem [shape: f32[1,128], index: 5, kind: input, shape index: {}]
  %s6 = inlined_call_operand.hbm [shape: f32[2,1,128], index: 6, kind: output, shape index: {0}]
  %s7 = inlined_call_operand.hbm [shape: f32[2,1,128], index: 7, kind: output, shape index: {1}]
  %8 = xla_tuple %s6, %s7
  %s9 = sld [smem:[#allocation0]]
  $region73: #{standard_model_forward.1} parent=0
    _
  %s11 = ssub.s32 1, %s9
  %s12 = scalar_select 0, %s11, %s9
  $region1: #{standard_model_forward.1} parent=0
    #allocation3 [shape = 'u8[1024]{0}', space=vmem, size = 0x400, scoped, tag = 'output window, operand 0']
    #allocation4 [shape = 's32[2]{0}', space=sflag, size = 0x8, scoped, tag = 'scoped memory for standard_model_forward.1']
    #allocation5 [shape = 'u8[1024]{0}', space=vmem, size = 0x400, scoped, tag = 'output window, operand 1']
    #allocation6 [shape = 's32[2]{0}', space=sflag, size = 0x8, scoped, tag = 'scoped memory for standard_model_forward.1']
    %13 = vsyncpa [#allocation4], 0
    %s14 = scalar_lea.sflag [#allocation4], 1
    %15 = vsyncpa %s14, 0
    %16 = vsyncpa [#allocation6], 0
    %s17 = scalar_lea.sflag [#allocation6], 1
    %18 = vsyncpa %s17, 0
    loop: start=0, step=1, limit=6
    $region2: #{standard_model_forward.1} parent=1 // loop_pre_header
      _
    $region3: #{standard_model_forward.1} parent=1 // loop_header
      %s20 = sphi 0, %s24
      %p21 = scmp.ge.s32.totalorder %s20, 6
      %s27 = sphi 0, %s39
      %s28 = sphi 0, %s35
      %s29 = sphi 0, %s27
      %s30 = sphi 0, %s28
      %s31 = sphi 0, %s29
      %s32 = sphi 0, %s30
      %s44 = sphi 0, %s46
      %s47 = sphi 0, %s44
      %s48 = sphi 0, %s47
      %s64 = sphi 0, %s48
      %s68 = sphi 0, %s68
      %s70 = sphi 0, %s68
      %s71 = sphi 0, %s70
      %s85 = sphi 0, %s71
      %s89 = sphi 0, %s89
      %s91 = sphi 0, %s89
      %s92 = sphi 0, %s91
      %s106 = sphi 0, %s92
      %s110 = sphi 0, %s110
      %s112 = sphi 0, %s110
      %s113 = sphi 0, %s112
      %s127 = sphi 0, %s113
      %s131 = sphi 0, %s131
      %s133 = sphi 0, %s131
      %s134 = sphi 0, %s133
      %s148 = sphi 0, %s134
      %s152 = sphi 0, %s152
      %s154 = sphi 0, %s152
      %s155 = sphi 0, %s154
      %s169 = sphi 0, %s155
      %s175 = sphi 0, %s177
      %s178 = sphi 0, %s175
      %s179 = sphi 0, %s178
      %s195 = sphi 0, %s179
      %s201 = sphi 0, %s203
      %s204 = sphi 0, %s201
      %s205 = sphi 0, %s204
      %s221 = sphi 0, %s205
    $region4: #{standard_model_forward.1} parent=1 // loop_header_branch
      %23 = sbr.rel (%p21) target = $region8
    $region5: #{standard_model_forward.1} parent=1 // loop_body
      %s25 = ssub.s32 %s20, 1
      %s26 = ssub.s32 %s20, 2
      %s33 = sadd.s32 1, %s28
      %p34 = scmp.ge.s32.totalorder %s33, 2
      %s35 = scalar_select %p34, 0, %s33
      %s36 = sadd.s32 1, %s27
      %s37 = scalar_select %p34, %s36, %s27
      %p38 = scmp.ge.s32.totalorder %s37, 2
      %s39 = scalar_select %p38, 0, %s37
      %s40 = ssub.s32 %s27, %s39
      %s41 = ssub.s32 %s28, %s35
      %s42 = sor.u32 %s40, %s41
      %p43 = scmp.eq.s32.totalorder %s42, 0
      %s45 = sadd.s32 %s44, 1
      %s46 = scalar_select %p43, %s44, %s45
      %p49 = pneg %p43
      %p50 = scmp.eq.s32.totalorder %s20, 3
      %p51 = por %p49, %p50
      %p52 = scmp.ne.s32.totalorder %s44, %s47
      %p53 = scmp.eq.s32.totalorder %s20, 0
      %p54 = por %p52, %p53
      %p55 = scmp.ne.s32.totalorder %s44, %s47
      %p56 = scmp.eq.s32.totalorder %s25, 3
      %p57 = por %p55, %p56
      %p58 = scmp.ne.s32.totalorder %s47, %s48
      %p59 = scmp.eq.s32.totalorder %s25, 0
      %p60 = por %p58, %p59
      %p61 = scmp.ne.s32.totalorder %s47, %s48
      %p62 = scmp.eq.s32.totalorder %s26, 3
      %p63 = por %p61, %p62
      %p65 = scmp.ne.s32.totalorder %s48, %s64
      %p66 = scmp.eq.s32.totalorder %s26, 0
      %p67 = por %p65, %p66
      %s69 = sadd.s32 %s68, 1
      %p72 = scmp.eq.s32.totalorder %s20, 3
      %p73 = scmp.ne.s32.totalorder %s68, %s70
      %p74 = scmp.eq.s32.totalorder %s20, 0
      %p75 = por %p73, %p74
      %p76 = scmp.ne.s32.totalorder %s68, %s70
      %p77 = scmp.eq.s32.totalorder %s25, 3
      %p78 = por %p76, %p77
      %p79 = scmp.ne.s32.totalorder %s70, %s71
      %p80 = scmp.eq.s32.totalorder %s25, 0
      %p81 = por %p79, %p80
      %p82 = scmp.ne.s32.totalorder %s70, %s71
      %p83 = scmp.eq.s32.totalorder %s26, 3
      %p84 = por %p82, %p83
      %p86 = scmp.ne.s32.totalorder %s71, %s85
      %p87 = scmp.eq.s32.totalorder %s26, 0
      %p88 = por %p86, %p87
      %s90 = sadd.s32 %s89, 1
      %p93 = scmp.eq.s32.totalorder %s20, 3
      %p94 = scmp.ne.s32.totalorder %s89, %s91
      %p95 = scmp.eq.s32.totalorder %s20, 0
      %p96 = por %p94, %p95
      %p97 = scmp.ne.s32.totalorder %s89, %s91
      %p98 = scmp.eq.s32.totalorder %s25, 3
      %p99 = por %p97, %p98
      %p100 = scmp.ne.s32.totalorder %s91, %s92
      %p101 = scmp.eq.s32.totalorder %s25, 0
      %p102 = por %p100, %p101
      %p103 = scmp.ne.s32.totalorder %s91, %s92
      %p104 = scmp.eq.s32.totalorder %s26, 3
      %p105 = por %p103, %p104
      %p107 = scmp.ne.s32.totalorder %s92, %s106
      %p108 = scmp.eq.s32.totalorder %s26, 0
      %p109 = por %p107, %p108
      %s111 = sadd.s32 %s110, 1
      %p114 = scmp.eq.s32.totalorder %s20, 3
      %p115 = scmp.ne.s32.totalorder %s110, %s112
      %p116 = scmp.eq.s32.totalorder %s20, 0
      %p117 = por %p115, %p116
      %p118 = scmp.ne.s32.totalorder %s110, %s112
      %p119 = scmp.eq.s32.totalorder %s25, 3
      %p120 = por %p118, %p119
      %p121 = scmp.ne.s32.totalorder %s112, %s113
      %p122 = scmp.eq.s32.totalorder %s25, 0
      %p123 = por %p121, %p122
      %p124 = scmp.ne.s32.totalorder %s112, %s113
      %p125 = scmp.eq.s32.totalorder %s26, 3
      %p126 = por %p124, %p125
      %p128 = scmp.ne.s32.totalorder %s113, %s127
      %p129 = scmp.eq.s32.totalorder %s26, 0
      %p130 = por %p128, %p129
      %s132 = sadd.s32 %s131, 1
      %p135 = scmp.eq.s32.totalorder %s20, 3
      %p136 = scmp.ne.s32.totalorder %s131, %s133
      %p137 = scmp.eq.s32.totalorder %s20, 0
      %p138 = por %p136, %p137
      %p139 = scmp.ne.s32.totalorder %s131, %s133
      %p140 = scmp.eq.s32.totalorder %s25, 3
      %p141 = por %p139, %p140
      %p142 = scmp.ne.s32.totalorder %s133, %s134
      %p143 = scmp.eq.s32.totalorder %s25, 0
      %p144 = por %p142, %p143
      %p145 = scmp.ne.s32.totalorder %s133, %s134
      %p146 = scmp.eq.s32.totalorder %s26, 3
      %p147 = por %p145, %p146
      %p149 = scmp.ne.s32.totalorder %s134, %s148
      %p150 = scmp.eq.s32.totalorder %s26, 0
      %p151 = por %p149, %p150
      %s153 = sadd.s32 %s152, 1
      %p156 = scmp.eq.s32.totalorder %s20, 3
      %p157 = scmp.ne.s32.totalorder %s152, %s154
      %p158 = scmp.eq.s32.totalorder %s20, 0
      %p159 = por %p157, %p158
      %p160 = scmp.ne.s32.totalorder %s152, %s154
      %p161 = scmp.eq.s32.totalorder %s25, 3
      %p162 = por %p160, %p161
      %p163 = scmp.ne.s32.totalorder %s154, %s155
      %p164 = scmp.eq.s32.totalorder %s25, 0
      %p165 = por %p163, %p164
      %p166 = scmp.ne.s32.totalorder %s154, %s155
      %p167 = scmp.eq.s32.totalorder %s26, 3
      %p168 = por %p166, %p167
      %p170 = scmp.ne.s32.totalorder %s155, %s169
      %p171 = scmp.eq.s32.totalorder %s26, 0
      %p172 = por %p170, %p171
      %s173 = ssub.s32 %s27, %s39
      %p174 = scmp.eq.s32.totalorder %s173, 0
      %s176 = sadd.s32 %s175, 1
      %s177 = scalar_select %p174, %s175, %s176
      %p180 = pneg %p174
      %p181 = scmp.eq.s32.totalorder %s20, 3
      %p182 = por %p180, %p181
      %p183 = scmp.ne.s32.totalorder %s175, %s178
      %p184 = scmp.eq.s32.totalorder %s20, 0
      %p185 = por %p183, %p184
      %p186 = scmp.ne.s32.totalorder %s175, %s178
      %p187 = scmp.eq.s32.totalorder %s25, 3
      %p188 = por %p186, %p187
      %p189 = scmp.ne.s32.totalorder %s178, %s179
      %p190 = scmp.eq.s32.totalorder %s25, 0
      %p191 = por %p189, %p190
      %p192 = scmp.ne.s32.totalorder %s178, %s179
      %p193 = scmp.eq.s32.totalorder %s26, 3
      %p194 = por %p192, %p193
      %p196 = scmp.ne.s32.totalorder %s179, %s195
      %p197 = scmp.eq.s32.totalorder %s26, 0
      %p198 = por %p196, %p197
      %s199 = ssub.s32 %s27, %s39
      %p200 = scmp.eq.s32.totalorder %s199, 0
      %s202 = sadd.s32 %s201, 1
      %s203 = scalar_select %p200, %s201, %s202
      %p206 = pneg %p200
      %p207 = scmp.eq.s32.totalorder %s20, 3
      %p208 = por %p206, %p207
      %p209 = scmp.ne.s32.totalorder %s201, %s204
      %p210 = scmp.eq.s32.totalorder %s20, 0
      %p211 = por %p209, %p210
      %p212 = scmp.ne.s32.totalorder %s201, %s204
      %p213 = scmp.eq.s32.totalorder %s25, 3
      %p214 = por %p212, %p213
      %p215 = scmp.ne.s32.totalorder %s204, %s205
      %p216 = scmp.eq.s32.totalorder %s25, 0
      %p217 = por %p215, %p216
      %p218 = scmp.ne.s32.totalorder %s204, %s205
      %p219 = scmp.eq.s32.totalorder %s26, 3
      %p220 = por %p218, %p219
      %p222 = scmp.ne.s32.totalorder %s205, %s221
      %p223 = scmp.eq.s32.totalorder %s26, 0
      %p224 = por %p222, %p223
      %p225 = scmp.le.s32.totalorder 1, %s20
      %p226 = scmp.lt.s32.totalorder %s20, 5
      %p227 = pnand %p225, %p226
      %p228 = pneg %p227
      // Predicated region
      $region9: #{standard_model_forward.1} parent=5 // pred_check
        _
      $region10: #{standard_model_forward.1} parent=5 // pred_check_branch
        %230 = sbr.rel (%p227) target = $region12
      $region11: #{standard_model_forward.1} parent=5 // pred_region
        %s231 = ssub.s32 %s20, 1
        // Predicated region
        $region13: #{standard_model_forward.1} parent=11 // pred_check
          %p232 = pneg %p81
        $region14: #{standard_model_forward.1} parent=11 // pred_check_branch
          %234 = sbr.rel (%p232) target = $region16
        $region15: #{standard_model_forward.1} parent=11 // pred_region
          _
        $region16: #{standard_model_forward.1} parent=11 // pred_fallthru
          _
        // Predicated region
        $region17: #{standard_model_forward.1} parent=11 // pred_check
          %p235 = pneg %p102
        $region18: #{standard_model_forward.1} parent=11 // pred_check_branch
          %237 = sbr.rel (%p235) target = $region20
        $region19: #{standard_model_forward.1} parent=11 // pred_region
          _
        $region20: #{standard_model_forward.1} parent=11 // pred_fallthru
          _
        // Predicated region
        $region21: #{standard_model_forward.1} parent=11 // pred_check
          %p238 = pneg %p123
        $region22: #{standard_model_forward.1} parent=11 // pred_check_branch
          %240 = sbr.rel (%p238) target = $region24
        $region23: #{standard_model_forward.1} parent=11 // pred_region
          _
        $region24: #{standard_model_forward.1} parent=11 // pred_fallthru
          _
        // Predicated region
        $region25: #{standard_model_forward.1} parent=11 // pred_check
          %p241 = pneg %p144
        $region26: #{standard_model_forward.1} parent=11 // pred_check_branch
          %243 = sbr.rel (%p241) target = $region28
        $region27: #{standard_model_forward.1} parent=11 // pred_region
          _
        $region28: #{standard_model_forward.1} parent=11 // pred_fallthru
          _
        // Predicated region
        $region29: #{standard_model_forward.1} parent=11 // pred_check
          %p244 = pneg %p165
        $region30: #{standard_model_forward.1} parent=11 // pred_check_branch
          %246 = sbr.rel (%p244) target = $region32
        $region31: #{standard_model_forward.1} parent=11 // pred_region
          _
        $region32: #{standard_model_forward.1} parent=11 // pred_fallthru
          _
      $region12: #{standard_model_forward.1} parent=5 // pred_fallthru
        _
      %p247 = scmp.lt.s32.totalorder %s20, 4
      // Predicated region
      $region33: #{standard_model_forward.1} parent=5 // pred_check
        %p248 = pneg %p247
      $region34: #{standard_model_forward.1} parent=5 // pred_check_branch
        %250 = sbr.rel (%p248) target = $region36
      $region35: #{standard_model_forward.1} parent=5 // pred_region
        // Predicated region
        $region37: #{standard_model_forward.1} parent=35 // pred_check
          %p251 = pneg %p54
        $region38: #{standard_model_forward.1} parent=35 // pred_check_branch
          %253 = sbr.rel (%p251) target = $region40
        $region39: #{standard_model_forward.1} parent=35 // pred_region
          %s254 = smul.u32 16, %s28
          %p255 = scmp.lt.s32.totalorder %s27, 1
          %s256 = scalar_select %p255, %s27, 1
          %p257 = scmp.lt.s32.totalorder %s254, 31
          %s258 = scalar_select %p257, %s254, 31
          %s259 = smul.addr %s256, 32
          %s260 = sadd.s32 %s258, %s259
          %s261 = smul.addr %s260, 4
          %s262 = scalar_lea.vmem %s0, %s261
          %s263 = smul.u32 16, %s28
        $region40: #{standard_model_forward.1} parent=35 // pred_fallthru
          _
      $region36: #{standard_model_forward.1} parent=5 // pred_fallthru
        _
      %p264 = scmp.le.s32.totalorder 1, %s20
      %p265 = scmp.lt.s32.totalorder %s20, 5
      %p266 = pnand %p264, %p265
      %p267 = pneg %p266
      // Predicated region
      $region41: #{standard_model_forward.1} parent=5 // pred_check
        _
      $region42: #{standard_model_forward.1} parent=5 // pred_check_branch
        %269 = sbr.rel (%p266) target = $region44
      $region43: #{standard_model_forward.1} parent=5 // pred_region
        %s270 = ssub.s32 %s20, 1
        %s271 = smul.u32 16, %s30
        %p272 = scmp.lt.s32.totalorder %s29, 1
        %s273 = scalar_select %p272, %s29, 1
        %p274 = scmp.lt.s32.totalorder %s271, 31
        %s275 = scalar_select %p274, %s271, 31
        %s276 = smul.addr %s273, 32
        %s277 = sadd.s32 %s275, %s276
        %s278 = smul.addr %s277, 4
        %s279 = scalar_lea.vmem %s0, %s278
        %p280 = pneg %p60
        %p281 = pneg %p57
        %p282 = pneg %p81
        %p283 = pneg %p78
        %p284 = pneg %p102
        %p285 = pneg %p99
        %p286 = pneg %p123
        %p287 = pneg %p120
        %p288 = pneg %p144
        %p289 = pneg %p141
        %p290 = pneg %p165
        %p291 = pneg %p162
        %p292 = pneg %p191
        %p293 = pneg %p188
        %s294 = sand.u32 %s178, 1
        %s295 = scalar_lea.sflag [#allocation4], %s294
        %s296 = sand.u32 %s178, 1
        %s297 = scalar_lea.vmem [#allocation3], %s296
        %p298 = pneg %p217
        %p299 = pneg %p214
        %s300 = sand.u32 %s204, 1
        %s301 = scalar_lea.sflag [#allocation6], %s300
        %s302 = sand.u32 %s204, 1
        %s303 = scalar_lea.vmem [#allocation5], %s302
        %s304 = smul.u32 16, %s30
        %p305 = scmp.lt.s32.totalorder %s29, 1
        %s306 = scalar_select %p305, %s29, 1
        %p307 = scmp.lt.s32.totalorder %s304, 31
        %s308 = scalar_select %p307, %s304, 31
        %s309 = smul.addr %s306, 32
        %s310 = sadd.s32 %s308, %s309
        %s311 = smul.addr %s310, 4
        %s312 = scalar_lea.vmem %s0, %s311
        %s313 = smul.u32 16, %s30
        %p315 = scmp.eq.s32.totalorder %s30, 0
        // Predicated region
        $region45: #{standard_model_forward.1} parent=43 // pred_check
          %p316 = pneg %p315
        $region46: #{standard_model_forward.1} parent=43 // pred_check_branch
          %318 = sbr.rel (%p316) target = $region48
        $region47: #{standard_model_forward.1} parent=43 // pred_region
          %319 = vst [vmem:[#allocation2] sm:$0xff] 0.0
          %320 = vst [vmem:[#allocation2 + $0x8] sm:$0xff] 0.0
          %321 = vst [vmem:[#allocation2 + $0x10] sm:$0xff] 0.0
          %322 = vst [vmem:[#allocation2 + $0x18] sm:$0xff] 0.0
          %323 = vst [vmem:[#allocation2 + $0x20] sm:$0xff] 0.0
          %324 = vst [vmem:[#allocation2 + $0x28] sm:$0xff] 0.0
          %325 = vst [vmem:[#allocation2 + $0x30] sm:$0xff] 0.0
          %326 = vst [vmem:[#allocation2 + $0x38] sm:$0xff] 0.0
          %327 = vst [vmem:[#allocation2 + $0x40] sm:$0xff] 0.0
          %328 = vst [vmem:[#allocation2 + $0x48] sm:$0xff] 0.0
          %329 = vst [vmem:[#allocation2 + $0x50] sm:$0xff] 0.0
          %330 = vst [vmem:[#allocation2 + $0x58] sm:$0xff] 0.0
          %331 = vst [vmem:[#allocation2 + $0x60] sm:$0xff] 0.0
          %332 = vst [vmem:[#allocation2 + $0x68] sm:$0xff] 0.0
          %333 = vst [vmem:[#allocation2 + $0x70] sm:$0xff] 0.0
          %334 = vst [vmem:[#allocation2 + $0x78] sm:$0xff] 0.0
        $region48: #{standard_model_forward.1} parent=43 // pred_fallthru
          _
        %v335 = vld [vmem:[%s312] sm:$0xf]
        %v336 = vld [vmem:[%s312 + $0x4] sm:$0xf]
        %v337 = vld [vmem:[%s312 + $0x8] sm:$0xf]
        %v338 = vld [vmem:[%s312 + $0xc] sm:$0xf]
        %v339 = vld [vmem:[%s312 + $0x10] sm:$0xf]
        %v340 = vld [vmem:[%s312 + $0x14] sm:$0xf]
        %v341 = vld [vmem:[%s312 + $0x18] sm:$0xf]
        %v342 = vld [vmem:[%s312 + $0x1c] sm:$0xf]
        %v343 = vld [vmem:[%s312 + $0x20] sm:$0xf]
        %v344 = vld [vmem:[%s312 + $0x24] sm:$0xf]
        %v345 = vld [vmem:[%s312 + $0x28] sm:$0xf]
        %v346 = vld [vmem:[%s312 + $0x2c] sm:$0xf]
        %v347 = vld [vmem:[%s312 + $0x30] sm:$0xf]
        %v348 = vld [vmem:[%s312 + $0x34] sm:$0xf]
        %v349 = vld [vmem:[%s312 + $0x38] sm:$0xf]
        %v350 = vld [vmem:[%s312 + $0x3c] sm:$0xf]
        %v351 = vld [vmem:[%s1] sm:$0xf]
        %v352 = vld [vmem:[%s1 + $0x4] sm:$0xf]
        %v353 = vld [vmem:[%s1 + $0x8] sm:$0xf]
        %v354 = vld [vmem:[%s1 + $0xc] sm:$0xf]
        %v355 = vld [vmem:[%s1 + $0x10] sm:$0x3]
        %v372 = vunpack.c.l.b16 %v335
        %v373 = vunpack.c.l.b16 %v336
        %v374 = vunpack.c.l.b16 %v337
        %v375 = vunpack.c.l.b16 %v338
        %v376 = vunpack.c.l.b16 %v339
        %v377 = vunpack.c.l.b16 %v340
        %v378 = vunpack.c.l.b16 %v341
        %v379 = vunpack.c.l.b16 %v342
        %v380 = vunpack.c.l.b16 %v343
        %v381 = vunpack.c.l.b16 %v344
        %v382 = vunpack.c.l.b16 %v345
        %v383 = vunpack.c.l.b16 %v346
        %v384 = vunpack.c.l.b16 %v347
        %v385 = vunpack.c.l.b16 %v348
        %v386 = vunpack.c.l.b16 %v349
        %v387 = vunpack.c.l.b16 %v350
        %v388 = vpack.c.b16 %v373, %v372
        %v389 = vpack.c.b16 %v375, %v374
        %v390 = vpack.c.b16 %v377, %v376
        %v391 = vpack.c.b16 %v379, %v378
        %v392 = vpack.c.b16 %v381, %v380
        %v393 = vpack.c.b16 %v383, %v382
        %v394 = vpack.c.b16 %v385, %v384
        %v395 = vpack.c.b16 %v387, %v386
        %v401 = vunpack.c.l.b16 %v351
        %v402 = vunpack.c.l.b16 %v352
        %v403 = vunpack.c.l.b16 %v353
        %v404 = vunpack.c.l.b16 %v354
        %v405 = vunpack.c.l.b16 %v355
        %v406 = vpack.c.b16 %v402, %v401
        %v407 = vpack.c.b16 %v404, %v403
        %v408 = vpack.c.b16 %v405, %v405
        %vm411 = vcmask 293888
        %v413 = vsel %vm411, %v388, 0
        %v416 = vsel %vm411, %v389, 0
        %v419 = vsel %vm411, %v390, 0
        %v422 = vsel %vm411, %v391, 0
        %v425 = vsel %vm411, %v392, 0
        %v428 = vsel %vm411, %v393, 0
        %v431 = vsel %vm411, %v394, 0
        %v434 = vsel %vm411, %v395, 0
        %vm436 = vcmask 1041408
        %v438 = vsel %vm436, %v408, 0
        %440 = vmatpush.bf16.msra.mxu0 0
        %441 = vmatpush.bf16.msra.mxu0 0
        %442 = vmatpush.bf16.msra.mxu0 0
        %443 = vmatpush.bf16.msra.mxu0 0
        %444 = vmatpush.bf16.msra.mxu0 0
        %445 = vmatpush.bf16.msra.mxu0 %v438
        %446 = vmatpush.bf16.msra.mxu0 %v407
        %447 = vmatpush.bf16.msra.mxu0 %v406
        %448 = vmatmul.bf16.gmra.mxu0 %v413
        %v449 = vpop.f32.mrf.mxu0
        %v450 = vadd.f32 0.0, %v449
        %v451 = vpop.f32.mrf.mxu0
        %v452 = vadd.f32 0.0, %v451
        %453 = vmatmul.bf16.gmra.mxu0 %v416
        %v454 = vpop.f32.mrf.mxu0
        %v455 = vadd.f32 0.0, %v454
        %v456 = vpop.f32.mrf.mxu0
        %v457 = vadd.f32 0.0, %v456
        %458 = vmatmul.bf16.gmra.mxu0 %v419
        %v459 = vpop.f32.mrf.mxu0
        %v460 = vadd.f32 0.0, %v459
        %v461 = vpop.f32.mrf.mxu0
        %v462 = vadd.f32 0.0, %v461
        %463 = vmatmul.bf16.gmra.mxu0 %v422
        %v464 = vpop.f32.mrf.mxu0
        %v465 = vadd.f32 0.0, %v464
        %v466 = vpop.f32.mrf.mxu0
        %v467 = vadd.f32 0.0, %v466
        %468 = vmatmul.bf16.gmra.mxu0 %v425
        %v469 = vpop.f32.mrf.mxu0
        %v470 = vadd.f32 0.0, %v469
        %v471 = vpop.f32.mrf.mxu0
        %v472 = vadd.f32 0.0, %v471
        %473 = vmatmul.bf16.gmra.mxu0 %v428
        %v474 = vpop.f32.mrf.mxu0
        %v475 = vadd.f32 0.0, %v474
        %v476 = vpop.f32.mrf.mxu0
        %v477 = vadd.f32 0.0, %v476
        %478 = vmatmul.bf16.gmra.mxu0 %v431
        %v479 = vpop.f32.mrf.mxu0
        %v480 = vadd.f32 0.0, %v479
        %v481 = vpop.f32.mrf.mxu0
        %v482 = vadd.f32 0.0, %v481
        %483 = vmatmul.bf16.gmra.mxu0 %v434
        %v484 = vpop.f32.mrf.mxu0
        %v485 = vadd.f32 0.0, %v484
        %v486 = vpop.f32.mrf.mxu0
        %v487 = vadd.f32 0.0, %v486
        %488 = vdwg.mxu0
        %v489 = vld [vmem:[#allocation2] sm:$0xff]
        %v490 = vld [vmem:[#allocation2 + $0x8] sm:$0xff]
        %v491 = vld [vmem:[#allocation2 + $0x10] sm:$0xff]
        %v492 = vld [vmem:[#allocation2 + $0x18] sm:$0xff]
        %v493 = vld [vmem:[#allocation2 + $0x20] sm:$0xff]
        %v494 = vld [vmem:[#allocation2 + $0x28] sm:$0xff]
        %v495 = vld [vmem:[#allocation2 + $0x30] sm:$0xff]
        %v496 = vld [vmem:[#allocation2 + $0x38] sm:$0xff]
        %v497 = vld [vmem:[#allocation2 + $0x40] sm:$0xff]
        %v498 = vld [vmem:[#allocation2 + $0x48] sm:$0xff]
        %v499 = vld [vmem:[#allocation2 + $0x50] sm:$0xff]
        %v500 = vld [vmem:[#allocation2 + $0x58] sm:$0xff]
        %v501 = vld [vmem:[#allocation2 + $0x60] sm:$0xff]
        %v502 = vld [vmem:[#allocation2 + $0x68] sm:$0xff]
        %v503 = vld [vmem:[#allocation2 + $0x70] sm:$0xff]
        %v504 = vld [vmem:[#allocation2 + $0x78] sm:$0xff]
        %v505 = vmax.f32 %v450, 0.0
        %v506 = vmax.f32 %v452, 0.0
        %v507 = vmax.f32 %v455, 0.0
        %v508 = vmax.f32 %v457, 0.0
        %v509 = vmax.f32 %v460, 0.0
        %v510 = vmax.f32 %v462, 0.0
        %v511 = vmax.f32 %v465, 0.0
        %v512 = vmax.f32 %v467, 0.0
        %v513 = vmax.f32 %v470, 0.0
        %v514 = vmax.f32 %v472, 0.0
        %v515 = vmax.f32 %v475, 0.0
        %v516 = vmax.f32 %v477, 0.0
        %v517 = vmax.f32 %v480, 0.0
        %v518 = vmax.f32 %v482, 0.0
        %v519 = vmax.f32 %v485, 0.0
        %v520 = vmax.f32 %v487, 0.0
        %v521 = vadd.f32 %v489, %v505
        %v522 = vadd.f32 %v490, %v506
        %v523 = vadd.f32 %v491, %v507
        %v524 = vadd.f32 %v492, %v508
        %v525 = vadd.f32 %v493, %v509
        %v526 = vadd.f32 %v494, %v510
        %v527 = vadd.f32 %v495, %v511
        %v528 = vadd.f32 %v496, %v512
        %v529 = vadd.f32 %v497, %v513
        %v530 = vadd.f32 %v498, %v514
        %v531 = vadd.f32 %v499, %v515
        %v532 = vadd.f32 %v500, %v516
        %v533 = vadd.f32 %v501, %v517
        %v534 = vadd.f32 %v502, %v518
        %v535 = vadd.f32 %v503, %v519
        %v536 = vadd.f32 %v504, %v520
        %537 = vst [vmem:[#allocation2] sm:$0xff] %v521
        %538 = vst [vmem:[#allocation2 + $0x8] sm:$0xff] %v522
        %539 = vst [vmem:[#allocation2 + $0x10] sm:$0xff] %v523
        %540 = vst [vmem:[#allocation2 + $0x18] sm:$0xff] %v524
        %541 = vst [vmem:[#allocation2 + $0x20] sm:$0xff] %v525
        %542 = vst [vmem:[#allocation2 + $0x28] sm:$0xff] %v526
        %543 = vst [vmem:[#allocation2 + $0x30] sm:$0xff] %v527
        %544 = vst [vmem:[#allocation2 + $0x38] sm:$0xff] %v528
        %545 = vst [vmem:[#allocation2 + $0x40] sm:$0xff] %v529
        %546 = vst [vmem:[#allocation2 + $0x48] sm:$0xff] %v530
        %547 = vst [vmem:[#allocation2 + $0x50] sm:$0xff] %v531
        %548 = vst [vmem:[#allocation2 + $0x58] sm:$0xff] %v532
        %549 = vst [vmem:[#allocation2 + $0x60] sm:$0xff] %v533
        %550 = vst [vmem:[#allocation2 + $0x68] sm:$0xff] %v534
        %551 = vst [vmem:[#allocation2 + $0x70] sm:$0xff] %v535
        %552 = vst [vmem:[#allocation2 + $0x78] sm:$0xff] %v536
        %p553 = scmp.eq.s32.totalorder %s30, 1
        // Predicated region
        $region49: #{standard_model_forward.1} parent=43 // pred_check
          %p554 = pneg %p553
        $region50: #{standard_model_forward.1} parent=43 // pred_check_branch
          %556 = sbr.rel (%p554) target = $region52
        $region51: #{standard_model_forward.1} parent=43 // pred_region
          %v557 = vld [vmem:[#allocation2] sm:$0xff]
          %v558 = vld [vmem:[#allocation2 + $0x8] sm:$0xff]
          %v559 = vld [vmem:[#allocation2 + $0x10] sm:$0xff]
          %v560 = vld [vmem:[#allocation2 + $0x18] sm:$0xff]
          %v561 = vld [vmem:[#allocation2 + $0x20] sm:$0xff]
          %v562 = vld [vmem:[#allocation2 + $0x28] sm:$0xff]
          %v563 = vld [vmem:[#allocation2 + $0x30] sm:$0xff]
          %v564 = vld [vmem:[#allocation2 + $0x38] sm:$0xff]
          %v565 = vld [vmem:[#allocation2 + $0x40] sm:$0xff]
          %v566 = vld [vmem:[#allocation2 + $0x48] sm:$0xff]
          %v567 = vld [vmem:[#allocation2 + $0x50] sm:$0xff]
          %v568 = vld [vmem:[#allocation2 + $0x58] sm:$0xff]
          %v569 = vld [vmem:[#allocation2 + $0x60] sm:$0xff]
          %v570 = vld [vmem:[#allocation2 + $0x68] sm:$0xff]
          %v571 = vld [vmem:[#allocation2 + $0x70] sm:$0xff]
          %v572 = vld [vmem:[#allocation2 + $0x78] sm:$0xff]
          %v573 = vadd.f32 %v557, %v558
          %v574 = vadd.f32 %v573, %v559
          %v575 = vadd.f32 %v574, %v560
          %v576 = vadd.f32 %v575, %v561
          %v577 = vadd.f32 %v576, %v562
          %v578 = vadd.f32 %v577, %v563
          %v579 = vadd.f32 %v578, %v564
          %v580 = vadd.f32 %v579, %v565
          %v581 = vadd.f32 %v580, %v566
          %v582 = vadd.f32 %v581, %v567
          %v583 = vadd.f32 %v582, %v568
          %v584 = vadd.f32 %v583, %v569
          %v585 = vadd.f32 %v584, %v570
          %v586 = vadd.f32 %v585, %v571
          %v587 = vadd.f32 %v586, %v572
          %v588 = vrot.slane %v587, 4
          %v589 = vadd.f32 %v587, %v588
          %v590 = vrot.slane %v589, 2
          %v591 = vadd.f32 %v589, %v590
          %v592 = vrot.slane %v591, 1
          %v593 = vadd.f32 %v591, %v592
          %v594 = vmul.f32 %v593, 0.00390625
          %v595 = vld [vmem:[%s2] sm:$0x1]
          %v596 = vsub.f32 %v594, %v595
          %v597 = vld [vmem:[%s3] sm:$0x1]
          %v598 = vmul.f32 %v596, %v597
          %599 = vst [vmem:[%s303] sm:$0x1] %v598
          %v600 = vld [vmem:[%s4] sm:$0xff]
          %v601 = vld [vmem:[%s4 + $0x8] sm:$0xff]
          %v602 = vld [vmem:[%s4 + $0x10] sm:$0xff]
          %v603 = vld [vmem:[%s4 + $0x18] sm:$0xff]
          %v604 = vld [vmem:[%s4 + $0x20] sm:$0xff]
          %v605 = vld [vmem:[%s4 + $0x28] sm:$0xff]
          %v606 = vld [vmem:[%s4 + $0x30] sm:$0xff]
          %v607 = vld [vmem:[%s4 + $0x38] sm:$0xff]
          %v608 = vld [vmem:[%s4 + $0x40] sm:$0xff]
          %v609 = vld [vmem:[%s4 + $0x48] sm:$0xff]
          %v610 = vld [vmem:[%s4 + $0x50] sm:$0xff]
          %v611 = vld [vmem:[%s4 + $0x58] sm:$0xff]
          %v612 = vld [vmem:[%s4 + $0x60] sm:$0xff]
          %v613 = vld [vmem:[%s4 + $0x68] sm:$0xff]
          %v614 = vld [vmem:[%s4 + $0x70] sm:$0xff]
          %v615 = vld [vmem:[%s4 + $0x78] sm:$0xff]
          %v616 = vld [vmem:[%s5] sm:$0x1]
          %617 = vmatpush.msra.mxu0 %v615
          %618 = vmatpush.msra.mxu0 %v614
          %619 = vmatpush.msra.mxu0 %v613
          %620 = vmatpush.msra.mxu0 %v612
          %621 = vmatpush.msra.mxu0 %v611
          %622 = vmatpush.msra.mxu0 %v610
          %623 = vmatpush.msra.mxu0 %v609
          %624 = vmatpush.msra.mxu0 %v608
          %625 = vmatpush.msra.mxu0 %v607
          %626 = vmatpush.msra.mxu0 %v606
          %627 = vmatpush.msra.mxu0 %v605
          %628 = vmatpush.msra.mxu0 %v604
          %629 = vmatpush.msra.mxu0 %v603
          %630 = vmatpush.msra.mxu0 %v602
          %631 = vmatpush.msra.mxu0 %v601
          %632 = vmatpush.msra.mxu0 %v600
          %633 = vmatmul.f32.gmra.mxu0 %v598
          %v634 = vpop.f32.mrf.mxu0
          %v635 = vadd.f32 %v616, %v634
          %636 = vdwg.mxu0
          %637 = vst [vmem:[%s297] sm:$0x1] %v635
        $region52: #{standard_model_forward.1} parent=43 // pred_fallthru
          _
        %s638 = sand.u32 %s178, 1
        %s639 = scalar_lea.sflag [#allocation4], %s638
        %s640 = sand.u32 %s178, 1
        %s641 = scalar_lea.vmem [#allocation3], %s640
        %s642 = sand.u32 %s204, 1
        %s643 = scalar_lea.sflag [#allocation6], %s642
        %s644 = sand.u32 %s204, 1
        %s645 = scalar_lea.vmem [#allocation5], %s644
        // Predicated region
        $region53: #{standard_model_forward.1} parent=43 // pred_check
          %p646 = pneg %p188
        $region54: #{standard_model_forward.1} parent=43 // pred_check_branch
          %648 = sbr.rel (%p646) target = $region56
        $region55: #{standard_model_forward.1} parent=43 // pred_region
          %650 = vsyncadd %s639, 0
          %s651 = scalar_lea.hbm %s6, %s29
          %s653 = sshll.u32 %s641, 4
          %s654 = int_to_ptr.vmem [resolvable:$true] %s653
          %s655 = sshll.u32 %s651, 4
          %s656 = int_to_ptr.hbm [resolvable:$true] %s655
          %658 = dma.vmem_to_hbm [thread:$0]  %s654, 16, %s656, %s639
        $region56: #{standard_model_forward.1} parent=43 // pred_fallthru
          _
        // Predicated region
        $region57: #{standard_model_forward.1} parent=43 // pred_check
          %p659 = pneg %p214
        $region58: #{standard_model_forward.1} parent=43 // pred_check_branch
          %661 = sbr.rel (%p659) target = $region60
        $region59: #{standard_model_forward.1} parent=43 // pred_region
          %663 = vsyncadd %s643, 0
          %s664 = scalar_lea.hbm %s7, %s29
          %s666 = sshll.u32 %s645, 4
          %s667 = int_to_ptr.vmem [resolvable:$true] %s666
          %s668 = sshll.u32 %s664, 4
          %s669 = int_to_ptr.hbm [resolvable:$true] %s668
          %671 = dma.vmem_to_hbm [thread:$0]  %s667, 16, %s669, %s643
        $region60: #{standard_model_forward.1} parent=43 // pred_fallthru
          _
      $region44: #{standard_model_forward.1} parent=5 // pred_fallthru
        _
      %p672 = scmp.le.s32.totalorder 2, %s20
      // Predicated region
      $region61: #{standard_model_forward.1} parent=5 // pred_check
        %p673 = pneg %p672
      $region62: #{standard_model_forward.1} parent=5 // pred_check_branch
        %675 = sbr.rel (%p673) target = $region64
      $region63: #{standard_model_forward.1} parent=5 // pred_region
        %s676 = ssub.s32 %s20, 2
        // Predicated region
        $region65: #{standard_model_forward.1} parent=63 // pred_check
          %p677 = pneg %p194
        $region66: #{standard_model_forward.1} parent=63 // pred_check_branch
          %679 = sbr.rel (%p677) target = $region68
        $region67: #{standard_model_forward.1} parent=63 // pred_region
          %s680 = sand.u32 %s179, 1
          %s681 = scalar_lea.sflag [#allocation4], %s680
          %s682 = sand.u32 %s179, 1
          %s683 = scalar_lea.vmem [#allocation3], %s682
          %685 = dma.done %s681, 16
        $region68: #{standard_model_forward.1} parent=63 // pred_fallthru
          _
        // Predicated region
        $region69: #{standard_model_forward.1} parent=63 // pred_check
          %p686 = pneg %p220
        $region70: #{standard_model_forward.1} parent=63 // pred_check_branch
          %688 = sbr.rel (%p686) target = $region72
        $region71: #{standard_model_forward.1} parent=63 // pred_region
          %s689 = sand.u32 %s205, 1
          %s690 = scalar_lea.sflag [#allocation6], %s689
          %s691 = sand.u32 %s205, 1
          %s692 = scalar_lea.vmem [#allocation5], %s691
          %694 = dma.done %s690, 16
        $region72: #{standard_model_forward.1} parent=63 // pred_fallthru
          _
      $region64: #{standard_model_forward.1} parent=5 // pred_fallthru
        _
    $region6: #{standard_model_forward.1} parent=1 // loop_footer
      %s24 = sadd.s32 1, %s20
    $region7: #{standard_model_forward.1} parent=1 // loop_footer_branch
      %19 = sbr.rel target = $region3
    $region8: #{standard_model_forward.1} parent=1 // loop_exit
      _
    %695 = vsyncpa [#allocation4], 1
    %s696 = scalar_lea.sflag [#allocation4], 1
    %697 = vsyncpa %s696, 1
    %698 = vsyncpa [#allocation6], 1
    %s699 = scalar_lea.sflag [#allocation6], 1
    %700 = vsyncpa %s699, 1

</llo_original>
